<compile_context>
chip_gen: v6e
topology: v6e:2x2x1
jax: 0.10.0
libtpu: 0.0.40
codegen_flags: <defaults>
</compile_context>

<pallas_src>
import jax
import jax.numpy as jnp
from jax.experimental import pallas as pl
from jax.experimental.pallas import tpu as pltpu


def _cat_bool_kernel(x_ref, o_ref):
    # x_ref: (TR, L) block of the flattened (padded) input.
    # o_ref: (2, TR, L) block of the flattened output; half 0 = x, half 1 = x.bool().
    x = x_ref[...]
    o_ref[0] = x
    o_ref[1] = (x != 0).astype(o_ref.dtype)


def _per_chip_budget():
    """(input-tile target bytes, scoped-VMEM limit) tuned per TPU generation."""
    try:
        vmem = pltpu.get_tpu_info().vmem_capacity_bytes
    except Exception:
        vmem = 0
    if vmem >= (96 << 20):
        # v5e / v6e: 128 MiB VMEM per core -> bigger DMAs, fewer grid steps.
        return 4 << 20, 64 << 20
    # v7x (64 MiB per TC, both cores live) or unknown: stay conservative.
    return 2 << 20, 32 << 20


def _plan_layout(total, sub_mult):
    """Pad `total` to a lane/sublane-aligned count and factor it as
    (padded_total, rows, lanes) with lanes % 128 == 0 and rows % sub_mult == 0,
    so all loads/stores are lane-dense and unmasked."""
    align = sub_mult * 128
    padded_total = ((total + align - 1) // align) * align
    for lanes in (2048, 1024, 512, 256, 128):
        if padded_total % lanes == 0 and (padded_total // lanes) % sub_mult == 0:
            return padded_total, padded_total // lanes, lanes
    # Unreachable: lanes=128 always satisfies both conditions after padding.
    return padded_total, padded_total // 128, 128


def _pick_row_tile(rows, lanes, itemsize, sub_mult, target_bytes):
    """Largest sublane-aligned row-tile dividing `rows` whose input block stays
    at or under target_bytes, preferring an even number of tiles (v7x split)."""
    row_bytes = lanes * itemsize
    max_tr = max(sub_mult, (target_bytes // row_bytes) // sub_mult * sub_mult)
    cands = []
    tr = (min(rows, max_tr) // sub_mult) * sub_mult
    while tr >= sub_mult:
        if rows % tr == 0:
            cands.append(tr)
        tr -= sub_mult
    if not cands:  # unreachable: padding guarantees rows % sub_mult == 0
        return rows
    best = cands[0]  # largest tile within the byte budget
    # v7x megacore: prefer an even tile count so the "parallel" axis splits
    # evenly across both TensorCores, as long as it costs < 2x grid steps.
    # Don't bother splitting trivially small inputs (< 512 KiB).
    if (rows // best) % 2 == 1 and rows * row_bytes > (1 << 19):
        for c in cands:
            if (rows // c) % 2 == 0 and 2 * c >= best:
                best = c
                break
    return best


def _call_kernel(x2d, rows, lanes, tr, num_tiles, dtype, vmem_limit, cost,
                 buffered_out):
    out_kwargs = {}
    if buffered_out:
        # Output traffic is 2x input; a third output buffer keeps writebacks
        # queued across step boundaries. Fits the VMEM budget on all gens.
        out_kwargs = dict(pipeline_mode=pl.Buffered(3))
    out_spec = pl.BlockSpec((2, tr, lanes), lambda j: (0, j, 0), **out_kwargs)
    return pl.pallas_call(
        _cat_bool_kernel,
        out_shape=jax.ShapeDtypeStruct((2, rows, lanes), dtype),
        grid=(num_tiles,),
        in_specs=[pl.BlockSpec((tr, lanes), lambda j: (j, 0))],
        out_specs=out_spec,
        compiler_params=pltpu.CompilerParams(
            dimension_semantics=("parallel",),
            vmem_limit_bytes=vmem_limit,
        ),
        cost_estimate=cost,
    )(x2d)


def cat_module_forward(x):
    """Equivalent of CatModule.forward for an NCHW float input."""
    orig_shape = x.shape
    n = orig_shape[0]
    rest = tuple(orig_shape[1:])
    total = 1
    for d in orig_shape:
        total *= d

    itemsize = jnp.dtype(x.dtype).itemsize
    sub_mult = {4: 8, 2: 16, 1: 32}.get(itemsize, 8)

    target_bytes, vmem_limit = _per_chip_budget()
    padded_total, rows, lanes = _plan_layout(total, sub_mult)
    tr = _pick_row_tile(rows, lanes, itemsize, sub_mult, target_bytes)
    num_tiles = rows // tr

    x_flat = x.reshape(total)
    pad = padded_total - total
    if pad:
        x_flat = jnp.pad(x_flat, (0, pad))
    x2d = x_flat.reshape(rows, lanes)

    # Advisory hint so XLA schedules surrounding HLO around a large memory op.
    cost = pl.CostEstimate(flops=total, transcendentals=0,
                           bytes_accessed=3 * total * itemsize)

    try:
        out3d = _call_kernel(x2d, rows, lanes, tr, num_tiles, x.dtype,
                             vmem_limit, cost, buffered_out=True)
    except Exception:
        # TODO(synk): drop this fallback once pl.Buffered on out_specs is
        # confirmed supported on all deployed jax versions.
        out3d = _call_kernel(x2d, rows, lanes, tr, num_tiles, x.dtype,
                             vmem_limit, cost, buffered_out=False)

    # (2, rows, lanes) flattens to [x_flat, bool_flat] == cat along dim 0.
    if pad:
        out_flat = out3d.reshape(2, padded_total)[:, :total]
        return out_flat.reshape((2 * n,) + rest)
    return out3d.reshape((2 * n,) + rest)


if __name__ == "__main__":
    key = jax.random.PRNGKey(0)

    # Small NCHW input; include some exact zeros so the bool path is exercised.
    x = jax.random.normal(key, (2, 4, 16, 16), dtype=jnp.float32)
    x = jnp.where(jnp.abs(x) < 0.1, 0.0, x)

    out = jax.block_until_ready(cat_module_forward(x))
    ref = jnp.concatenate([x, (x != 0).astype(x.dtype)], axis=0)
    assert out.shape == (4, 4, 16, 16)
    assert out.dtype == x.dtype
    assert jnp.array_equal(out, ref)

    # Awkward element count (not a multiple of 1024) to exercise the
    # pad-and-trim fast-path hardening.
    x2 = jax.random.normal(jax.random.PRNGKey(1), (3, 5, 7, 11), dtype=jnp.float32)
    x2 = jnp.where(jnp.abs(x2) < 0.1, 0.0, x2)
    out2 = jax.block_until_ready(cat_module_forward(x2))
    ref2 = jnp.concatenate([x2, (x2 != 0).astype(x2.dtype)], axis=0)
    assert out2.shape == (6, 5, 7, 11)
    assert jnp.array_equal(out2, ref2)

    print("KERNEL_OK")
</pallas_src>

<mosaic_0001>
module attributes {stable_mosaic.version = 11 : i64} {
  func.func @_cat_bool_kernel(%arg0: i32, %arg1: memref<8x256xf32, #tpu.memory_space<vmem>>, %arg2: memref<2x8x256xf32, #tpu.memory_space<vmem>>) attributes {dimension_semantics = [#tpu.dimension_semantics<parallel>], iteration_bounds = array<i64: 1>, scalar_prefetch = 0 : i64, scratch_operands = 0 : i64, tpu.core_type = #tpu.core_type<tc>, window_params = [{transform_indices = @transform_0, window_bounds = array<i64: 8, 256>}, {transform_indices = @transform_1, window_bounds = array<i64: 2, 8, 256>}]} {
    %c0 = arith.constant 0 : index
    %c0_0 = arith.constant 0 : index
    %0 = vector.load %arg1[%c0, %c0_0] : memref<8x256xf32, #tpu.memory_space<vmem>>, vector<8x256xf32>
    %c0_1 = arith.constant 0 : index
    %c0_2 = arith.constant 0 : index
    %c0_3 = arith.constant 0 : index
    %1 = vector.load %arg2[%c0_1, %c0_2, %c0_3] : memref<2x8x256xf32, #tpu.memory_space<vmem>>, vector<1x8x256xf32>
    %2 = vector.shape_cast %1 : vector<1x8x256xf32> to vector<8x256xf32>
    %3 = vector.shape_cast %0 : vector<8x256xf32> to vector<1x8x256xf32>
    tpu.vector_store %arg2[%c0_1, %c0_2, %c0_3], %3 {strides = array<i32>} : memref<2x8x256xf32, #tpu.memory_space<vmem>>, vector<1x8x256xf32>,
    %cst = arith.constant 0.000000e+00 : f32
    %4 = vector.broadcast %cst : f32 to vector<8x256xf32>
    %5 = arith.cmpf one, %0, %4 : vector<8x256xf32>
    %6 = arith.extui %5 : vector<8x256xi1> to vector<8x256xi32>
    %7 = arith.sitofp %6 : vector<8x256xi32> to vector<8x256xf32>
    %c1 = arith.constant 1 : index
    %c0_4 = arith.constant 0 : index
    %c0_5 = arith.constant 0 : index
    %8 = vector.load %arg2[%c1, %c0_4, %c0_5] : memref<2x8x256xf32, #tpu.memory_space<vmem>>, vector<1x8x256xf32>
    %9 = vector.shape_cast %8 : vector<1x8x256xf32> to vector<8x256xf32>
    %10 = vector.shape_cast %7 : vector<8x256xf32> to vector<1x8x256xf32>
    tpu.vector_store %arg2[%c1, %c0_4, %c0_5], %10 {strides = array<i32>} : memref<2x8x256xf32, #tpu.memory_space<vmem>>, vector<1x8x256xf32>,
    return
  }
  func.func @transform_0(%arg0: i32) -> (i32, i32) {
    %c0_i32 = arith.constant 0 : i32
    %c0_i32_0 = arith.constant 0 : i32
    return %arg0, %c0_i32 : i32, i32
  }
  func.func @transform_1(%arg0: i32) -> (i32, i32, i32) {
    %c0_i32 = arith.constant 0 : i32
    %c0_i32_0 = arith.constant 0 : i32
    %c0_i32_1 = arith.constant 0 : i32
    return %c0_i32, %arg0, %c0_i32_0 : i32, i32, i32
  }
}

</mosaic_0001>

<llo_original>
// kernel: tpu_custom_call.1
$region0: #{tpu_custom_call.1}
  #allocation0 [shape = 'u32[]', space=smem, size = 0x4, offset = 0x4, fixed_abs, tag = 'smem constant byte address 0x4 - core index']
  #allocation1 [shape = 'u32[144,128]{1,0:T(1,128)}', space=vmem, size = 0x12000, scoped, tag = 'internal scratch']
  %s0 = inlined_call_operand.hbm [shape: f32[8,256], index: 0, kind: input, shape index: {}]
  %s1 = inlined_call_operand.hbm [shape: f32[2,8,256], index: 1, kind: output, shape index: {}]
  %s2 = sld [smem:[#allocation0]]
  $region18: #{tpu_custom_call.1} parent=0
    _
  %s4 = ssub.s32 1, %s2
  %s5 = scalar_select 0, %s4, %s2
  $region1: #{tpu_custom_call.1} parent=0
    #allocation2 [shape = 'u8[8192]{0}', space=vmem, size = 0x2000, scoped, tag = 'input window, operand 0, single buffered']
    #allocation3 [shape = 's32[1]{0}', space=sflag, size = 0x4, scoped, tag = 'scoped memory for tpu_custom_call.1']
    #allocation4 [shape = 's32[1]{0}', space=sflag, size = 0x4, scoped, tag = 'scoped memory for tpu_custom_call.1']
    #allocation5 [shape = 'u8[16384]{0}', space=vmem, size = 0x4000, scoped, tag = 'output window, operand 0, single buffered']
    %6 = vsyncpa [#allocation3], 0
    %7 = vsyncpa [#allocation4], 0
    // Predicated region
    $region2: #{tpu_custom_call.1} parent=1 // pred_check
      _
    $region3: #{tpu_custom_call.1} parent=1 // pred_check_branch
      %9 = sbr.rel (0) target = $region5
    $region4: #{tpu_custom_call.1} parent=1 // pred_region
      %s11 = ssub.s32 256, 256
      %12 = vsyncadd [#allocation3], %s11
      %s14 = sshll.u32 [#allocation2], 4
      %s15 = int_to_ptr.vmem [resolvable:$true] %s14
      %17 = dma.hbm_to_vmem [thread:$0]  %s0, 256, %s15, [#allocation3]
    $region5: #{tpu_custom_call.1} parent=1 // pred_fallthru
      _
    // Predicated region
    $region6: #{tpu_custom_call.1} parent=1 // pred_check
      _
    $region7: #{tpu_custom_call.1} parent=1 // pred_check_branch
      %19 = sbr.rel (0) target = $region9
    $region8: #{tpu_custom_call.1} parent=1 // pred_region
      %20 = dma.done [#allocation3], 256
    $region9: #{tpu_custom_call.1} parent=1 // pred_fallthru
      _
    %v21 = vld [vmem:[#allocation2] sm:$0xff]
    %v22 = vld [vmem:[#allocation2 + $0x8] sm:$0xff]
    %23 = vst [vmem:[#allocation5] sm:$0xff] %v21
    %24 = vst [vmem:[#allocation5 + $0x8] sm:$0xff] %v22
    %vm25 = vcmp.ne.f32.partialorder %v21, 0.0
    %vm26 = vcmp.ne.f32.partialorder %v22, 0.0
    %v27 = vsel %vm25, 1, 0
    %v28 = vsel %vm26, 1, 0
    %v29 = vcvt.s32.f32 %v27
    %v30 = vcvt.s32.f32 %v28
    %s31 = scalar_lea.vmem [#allocation5], 16
    %32 = vst [vmem:[%s31] sm:$0xff] %v29
    %33 = vst [vmem:[%s31 + $0x8] sm:$0xff] %v30
    // Predicated region
    $region10: #{tpu_custom_call.1} parent=1 // pred_check
      _
    $region11: #{tpu_custom_call.1} parent=1 // pred_check_branch
      %35 = sbr.rel (0) target = $region13
    $region12: #{tpu_custom_call.1} parent=1 // pred_region
      %s37 = ssub.s32 512, 512
      %38 = vsyncadd [#allocation4], %s37
      %s39 = sshll.u32 [#allocation5], 4
      %s40 = int_to_ptr.vmem [resolvable:$true] %s39
      %45 = dma.vmem_to_hbm [thread:$0]  %s40, 512, %s1, [#allocation4], 256, 256, 16
    $region13: #{tpu_custom_call.1} parent=1 // pred_fallthru
      _
    // Predicated region
    $region14: #{tpu_custom_call.1} parent=1 // pred_check
      _
    $region15: #{tpu_custom_call.1} parent=1 // pred_check_branch
      %47 = sbr.rel (0) target = $region17
    $region16: #{tpu_custom_call.1} parent=1 // pred_region
      %48 = dma.done [#allocation4], 512
    $region17: #{tpu_custom_call.1} parent=1 // pred_fallthru
      _
    %49 = vsyncpa [#allocation3], 1
    %50 = vsyncpa [#allocation4], 1

</llo_original>
